<compile_context>
chip_gen: v5e
topology: v5e:2x2
jax: 0.10.0
libtpu: 0.0.40
codegen_flags: <defaults>
</compile_context>

<pallas_src>
import functools

import numpy as np
import jax
import jax.numpy as jnp
from jax.experimental import pallas as pl
from jax.experimental.pallas import tpu as pltpu

_LANE = 128
_UNROLL = 8
_TARGET_X_BLOCK_BYTES = 2 * 1024 * 1024   # ~2 MiB of x per grid step


# --------------------------------------------------------------------------- #
# Pallas kernel: per-(b, c) sums of x*onehot(y), x, onehot(y)
# --------------------------------------------------------------------------- #
def _sums_kernel(x_ref, y_ref, out_ref, *, unroll):
    """Accumulate per-channel (Σ x·1[y==c], Σ x, Σ 1[y==c]) over voxel tiles.

    x_ref:   (C, tile_s) float32 probabilities for one batch item.
    y_ref:   (1, tile_s) int32 label map (padded voxels hold -1).
    out_ref: (3, C, 128) float32 lane-wide partial sums; resident across the
             voxel-tile grid axis, reduced over lanes once in the wrapper.
    """
    k = pl.program_id(1)

    @pl.when(k == 0)
    def _init():
        out_ref[...] = jnp.zeros_like(out_ref)

    C, tile_s = x_ref.shape
    n_chunks = tile_s // _LANE
    ch_ids = jax.lax.broadcasted_iota(jnp.int32, (C, _LANE), 0)
    zero = jnp.zeros((C, _LANE), jnp.float32)

    def body(j, carry):
        acc_xy, acc_x, acc_y = carry
        off = pl.multiple_of(j * _LANE, _LANE)
        xs = x_ref[:, pl.ds(off, _LANE)]                 # (C, 128) f32
        lab = y_ref[:, pl.ds(off, _LANE)]                # (1, 128) i32
        m = (lab == ch_ids).astype(jnp.float32)          # (C, 128) one-hot mask
        return (acc_xy + xs * m, acc_x + xs, acc_y + m)

    acc_xy, acc_x, acc_y = jax.lax.fori_loop(
        0, n_chunks, body, (zero, zero, zero), unroll=unroll)

    out_ref[0] += acc_xy
    out_ref[1] += acc_x
    out_ref[2] += acc_y


def _pick_tile(C, S):
    """Pick a lane-aligned voxel tile targeting ~2 MiB of x per block."""
    s_ceil = -(-S // _LANE) * _LANE
    chunk = _LANE * _UNROLL                         # 1024 lanes
    if s_ceil <= chunk:
        return s_ceil, True                         # few chunks -> full unroll
    target = _TARGET_X_BLOCK_BYTES // (C * 4)
    tile = max(chunk, (target // chunk) * chunk)    # multiple of 128*UNROLL
    tile = min(tile, -(-s_ceil // chunk) * chunk)   # never bigger than padded S
    return tile, _UNROLL


def _pallas_channel_sums(x3, lab3):
    """x3: (B, C, S) f32, lab3: (B, 1, S) i32  ->  (S_xy, S_x, S_y) each (B, C)."""
    B, C, S = x3.shape
    tile_s, unroll = _pick_tile(C, S)
    s_pad = -(-S // tile_s) * tile_s
    if s_pad != S:
        # Zero-pad x (contributes 0 to Σx, Σxy); pad labels with -1 (matches no
        # channel, so Σy is untouched).  tn is later derived from the true S.
        x3 = jnp.pad(x3, ((0, 0), (0, 0), (0, s_pad - S)))
        lab3 = jnp.pad(lab3, ((0, 0), (0, 0), (0, s_pad - S)), constant_values=-1)

    grid = (B, s_pad // tile_s)
    kernel = functools.partial(_sums_kernel, unroll=unroll)

    out = pl.pallas_call(
        kernel,
        out_shape=jax.ShapeDtypeStruct((B, 3, C, _LANE), jnp.float32),
        grid_spec=pltpu.PrefetchScalarGridSpec(
            num_scalar_prefetch=0,
            grid=grid,
            in_specs=[
                pl.BlockSpec((None, C, tile_s), lambda b, k: (b, 0, k)),
                pl.BlockSpec((None, 1, tile_s), lambda b, k: (b, 0, k)),
            ],
            out_specs=pl.BlockSpec((None, 3, C, _LANE), lambda b, k: (b, 0, 0, 0)),
        ),
        compiler_params=pltpu.CompilerParams(
            dimension_semantics=("parallel", "arbitrary"),
            vmem_limit_bytes=32 * 1024 * 1024,
        ),
    )(x3, lab3)

    per_bc = out.sum(axis=-1)                 # (B, 3, C): single cross-lane reduce
    return per_bc[:, 0], per_bc[:, 1], per_bc[:, 2]


# --------------------------------------------------------------------------- #
# Wrappers: tp/fp/fn/tn, a Pallas-backed union measure, and Exclusion_loss
# --------------------------------------------------------------------------- #
def _labels_from_target(y, x_shape):
    B = x_shape[0]
    if tuple(y.shape) == tuple(x_shape):
        # One-hot target -> recover the label map.
        # TODO(synk): soft (non-one-hot) targets are reduced to hard labels here.
        lab = jnp.argmax(y, axis=1)
    else:
        lab = y
        if lab.ndim == len(x_shape):          # (B, 1, spatial...)
            lab = lab[:, 0]
    return lab.reshape(B, 1, -1).astype(jnp.int32)


def get_tp_fp_fn_tn(net_output, target, apply_nonlin=None, batch=False):
    x = net_output
    if apply_nonlin is not None:
        x = apply_nonlin(x)
    shp = x.shape
    B, C = shp[0], shp[1]
    S = int(np.prod(shp[2:]))

    x3 = x.reshape(B, C, S).astype(jnp.float32)
    lab3 = _labels_from_target(target, shp)

    s_xy, s_x, s_y = _pallas_channel_sums(x3, lab3)
    tp = s_xy
    fp = s_x - s_xy
    fn = s_y - s_xy
    tn = jnp.float32(S) - s_x - s_y + s_xy
    if batch:
        tp, fp, fn, tn = tp.sum(0), fp.sum(0), fn.sum(0), tn.sum(0)
    return tp, fp, fn, tn


def soft_jaccard_union(network_output, target, apply_nonlin=None,
                       smooth=1e-5, do_bg=True, batch_union=False):
    """Pallas-backed default `union_func`: mean soft intersection-over-union."""
    tp, fp, fn, _ = get_tp_fp_fn_tn(network_output, target,
                                    apply_nonlin=apply_nonlin, batch=batch_union)
    union = tp + fp + fn                      # soft |A ∪ B|
    jac = (tp + smooth) / (union + smooth)
    if not do_bg:
        jac = jac[1:] if batch_union else jac[:, 1:]
    return jnp.mean(jac)


class ExclusionLoss:
    """JAX equivalent of Exclusion_loss(nn.Module): forward = -union(output, target)."""

    def __init__(self, union_func):
        self.union = union_func

    def __call__(self, network_output, target):
        return -self.union(network_output, target)


# --------------------------------------------------------------------------- #
# Self-test
# --------------------------------------------------------------------------- #
def _reference_loss(x, y, smooth=1e-5):
    C = x.shape[1]
    y_oh = jax.nn.one_hot(y[:, 0], C, axis=1, dtype=jnp.float32)
    sdims = tuple(range(2, x.ndim))
    tp = (x * y_oh).sum(sdims)
    fp = (x * (1.0 - y_oh)).sum(sdims)
    fn = ((1.0 - x) * y_oh).sum(sdims)
    jac = (tp + smooth) / (tp + fp + fn + smooth)
    return -jnp.mean(jac)


if __name__ == "__main__":
    key = jax.random.PRNGKey(0)
    loss_fn = ExclusionLoss(soft_jaccard_union)

    # Case 1: small, lane-multiple spatial size (full-unroll path).
    k1, k2, k3, k4 = jax.random.split(key, 4)
    B, C, H, W = 2, 4, 16, 16
    x1 = jax.random.uniform(k1, (B, C, H, W), dtype=jnp.float32)
    y1 = jax.random.randint(k2, (B, 1, H, W), 0, C, dtype=jnp.int32)
    loss1 = jax.block_until_ready(loss_fn(x1, y1))
    ref1 = _reference_loss(x1, y1)
    assert np.allclose(np.asarray(loss1), np.asarray(ref1), rtol=1e-5, atol=1e-6), (loss1, ref1)

    # Case 2: odd spatial size (exercises voxel padding + the unroll=8 path).
    H2, W2 = 37, 37
    x2 = jax.random.uniform(k3, (B, C, H2, W2), dtype=jnp.float32)
    y2 = jax.random.randint(k4, (B, 1, H2, W2), 0, C, dtype=jnp.int32)
    loss2 = jax.block_until_ready(loss_fn(x2, y2))
    ref2 = _reference_loss(x2, y2)
    assert np.allclose(np.asarray(loss2), np.asarray(ref2), rtol=1e-5, atol=1e-6), (loss2, ref2)

    print("KERNEL_OK")
</pallas_src>

<mosaic_0001>
module attributes {stable_mosaic.version = 11 : i64} {
  func.func @_sums_kernel(%arg0: i32, %arg1: i32, %arg2: memref<1x4x256xf32, #tpu.memory_space<vmem>>, %arg3: memref<1x1x256xi32, #tpu.memory_space<vmem>>, %arg4: memref<1x3x4x128xf32, #tpu.memory_space<vmem>>) attributes {dimension_semantics = [#tpu.dimension_semantics<parallel>, #tpu.dimension_semantics<arbitrary>], iteration_bounds = array<i64: 2, 1>, scalar_prefetch = 0 : i64, scratch_operands = 0 : i64, tpu.core_type = #tpu.core_type<tc>, window_params = [{transform_indices = @transform_0, window_bounds = array<i64: 1, 4, 256>}, {transform_indices = @transform_1, window_bounds = array<i64: 1, 1, 256>}, {transform_indices = @transform_2, window_bounds = array<i64: 1, 3, 4, 128>}]} {
    %c0_i32 = arith.constant 0 : i32
    %0 = arith.cmpi eq, %arg1, %c0_i32 : i32
    %1 = arith.extui %0 : i1 to i32
    %c0_i32_0 = arith.constant 0 : i32
    %2 = arith.cmpi ne, %1, %c0_i32_0 : i32
    scf.if %2 {
      %cst_32 = arith.constant 0.000000e+00 : f32
      %55 = vector.broadcast %cst_32 : f32 to vector<3x4x128xf32>
      %c0_33 = arith.constant 0 : index
      %c0_34 = arith.constant 0 : index
      %c0_35 = arith.constant 0 : index
      %c0_36 = arith.constant 0 : index
      %56 = vector.load %arg4[%c0_33, %c0_34, %c0_35, %c0_36] : memref<1x3x4x128xf32, #tpu.memory_space<vmem>>, vector<1x3x4x128xf32>
      %57 = vector.shape_cast %56 : vector<1x3x4x128xf32> to vector<3x4x128xf32>
      %58 = vector.shape_cast %55 : vector<3x4x128xf32> to vector<1x3x4x128xf32>
      tpu.vector_store %arg4[%c0_33, %c0_34, %c0_35, %c0_36], %58 {strides = array<i32>} : memref<1x3x4x128xf32, #tpu.memory_space<vmem>>, vector<1x3x4x128xf32>,
    } else {
    }
    %3 = tpu.iota {dimensions = array<i32: 0>} : vector<4x128xi32>
    %cst = arith.constant 0.000000e+00 : f32
    %4 = vector.broadcast %cst : f32 to vector<4x128xf32>
    %c0_i32_1 = arith.constant 0 : i32
    %c128_i32 = arith.constant 128 : i32
    %5 = arith.muli %c0_i32_1, %c128_i32 : i32
    %6 = tpu.assume_multiple %5, 128 : i32
    %c0 = arith.constant 0 : index
    %c0_2 = arith.constant 0 : index
    %7 = arith.index_cast %6 : i32 to index
    %8 = vector.load %arg2[%c0, %c0_2, %7] : memref<1x4x256xf32, #tpu.memory_space<vmem>>, vector<1x4x128xf32>
    %9 = vector.shape_cast %8 : vector<1x4x128xf32> to vector<4x128xf32>
    %c0_3 = arith.constant 0 : index
    %c0_4 = arith.constant 0 : index
    %10 = arith.index_cast %6 : i32 to index
    %11 = vector.load %arg3[%c0_3, %c0_4, %10] : memref<1x1x256xi32, #tpu.memory_space<vmem>>, vector<1x1x128xi32>
    %12 = vector.shape_cast %11 : vector<1x1x128xi32> to vector<1x128xi32>
    %13 = vector.broadcast %12 : vector<1x128xi32> to vector<4x128xi32>
    %14 = arith.cmpi eq, %13, %3 : vector<4x128xi32>
    %15 = arith.extui %14 : vector<4x128xi1> to vector<4x128xi32>
    %16 = arith.sitofp %15 : vector<4x128xi32> to vector<4x128xf32>
    %17 = arith.mulf %9, %16 : vector<4x128xf32>
    %18 = arith.addf %4, %17 : vector<4x128xf32>
    %19 = arith.addf %4, %9 : vector<4x128xf32>
    %20 = arith.addf %4, %16 : vector<4x128xf32>
    %c1_i32 = arith.constant 1 : i32
    %c128_i32_5 = arith.constant 128 : i32
    %21 = arith.muli %c1_i32, %c128_i32_5 : i32
    %22 = tpu.assume_multiple %21, 128 : i32
    %c0_6 = arith.constant 0 : index
    %c0_7 = arith.constant 0 : index
    %23 = arith.index_cast %22 : i32 to index
    %24 = vector.load %arg2[%c0_6, %c0_7, %23] : memref<1x4x256xf32, #tpu.memory_space<vmem>>, vector<1x4x128xf32>
    %25 = vector.shape_cast %24 : vector<1x4x128xf32> to vector<4x128xf32>
    %c0_8 = arith.constant 0 : index
    %c0_9 = arith.constant 0 : index
    %26 = arith.index_cast %22 : i32 to index
    %27 = vector.load %arg3[%c0_8, %c0_9, %26] : memref<1x1x256xi32, #tpu.memory_space<vmem>>, vector<1x1x128xi32>
    %28 = vector.shape_cast %27 : vector<1x1x128xi32> to vector<1x128xi32>
    %29 = vector.broadcast %28 : vector<1x128xi32> to vector<4x128xi32>
    %30 = arith.cmpi eq, %29, %3 : vector<4x128xi32>
    %31 = arith.extui %30 : vector<4x128xi1> to vector<4x128xi32>
    %32 = arith.sitofp %31 : vector<4x128xi32> to vector<4x128xf32>
    %33 = arith.mulf %25, %32 : vector<4x128xf32>
    %34 = arith.addf %18, %33 : vector<4x128xf32>
    %35 = arith.addf %19, %25 : vector<4x128xf32>
    %36 = arith.addf %20, %32 : vector<4x128xf32>
    %c2_i32 = arith.constant 2 : i32
    %c0_10 = arith.constant 0 : index
    %c0_11 = arith.constant 0 : index
    %c0_12 = arith.constant 0 : index
    %c0_13 = arith.constant 0 : index
    %37 = vector.load %arg4[%c0_10, %c0_11, %c0_12, %c0_13] : memref<1x3x4x128xf32, #tpu.memory_space<vmem>>, vector<1x1x4x128xf32>
    %38 = vector.shape_cast %37 : vector<1x1x4x128xf32> to vector<4x128xf32>
    %39 = arith.addf %38, %34 : vector<4x128xf32>
    %c0_14 = arith.constant 0 : index
    %c0_15 = arith.constant 0 : index
    %c0_16 = arith.constant 0 : index
    %c0_17 = arith.constant 0 : index
    %40 = vector.load %arg4[%c0_14, %c0_15, %c0_16, %c0_17] : memref<1x3x4x128xf32, #tpu.memory_space<vmem>>, vector<1x1x4x128xf32>
    %41 = vector.shape_cast %40 : vector<1x1x4x128xf32> to vector<4x128xf32>
    %42 = vector.shape_cast %39 : vector<4x128xf32> to vector<1x1x4x128xf32>
    tpu.vector_store %arg4[%c0_14, %c0_15, %c0_16, %c0_17], %42 {strides = array<i32>} : memref<1x3x4x128xf32, #tpu.memory_space<vmem>>, vector<1x1x4x128xf32>,
    %c0_18 = arith.constant 0 : index
    %c1 = arith.constant 1 : index
    %c0_19 = arith.constant 0 : index
    %c0_20 = arith.constant 0 : index
    %43 = vector.load %arg4[%c0_18, %c1, %c0_19, %c0_20] : memref<1x3x4x128xf32, #tpu.memory_space<vmem>>, vector<1x1x4x128xf32>
    %44 = vector.shape_cast %43 : vector<1x1x4x128xf32> to vector<4x128xf32>
    %45 = arith.addf %44, %35 : vector<4x128xf32>
    %c0_21 = arith.constant 0 : index
    %c1_22 = arith.constant 1 : index
    %c0_23 = arith.constant 0 : index
    %c0_24 = arith.constant 0 : index
    %46 = vector.load %arg4[%c0_21, %c1_22, %c0_23, %c0_24] : memref<1x3x4x128xf32, #tpu.memory_space<vmem>>, vector<1x1x4x128xf32>
    %47 = vector.shape_cast %46 : vector<1x1x4x128xf32> to vector<4x128xf32>
    %48 = vector.shape_cast %45 : vector<4x128xf32> to vector<1x1x4x128xf32>
    tpu.vector_store %arg4[%c0_21, %c1_22, %c0_23, %c0_24], %48 {strides = array<i32>} : memref<1x3x4x128xf32, #tpu.memory_space<vmem>>, vector<1x1x4x128xf32>,
    %c0_25 = arith.constant 0 : index
    %c2 = arith.constant 2 : index
    %c0_26 = arith.constant 0 : index
    %c0_27 = arith.constant 0 : index
    %49 = vector.load %arg4[%c0_25, %c2, %c0_26, %c0_27] : memref<1x3x4x128xf32, #tpu.memory_space<vmem>>, vector<1x1x4x128xf32>
    %50 = vector.shape_cast %49 : vector<1x1x4x128xf32> to vector<4x128xf32>
    %51 = arith.addf %50, %36 : vector<4x128xf32>
    %c0_28 = arith.constant 0 : index
    %c2_29 = arith.constant 2 : index
    %c0_30 = arith.constant 0 : index
    %c0_31 = arith.constant 0 : index
    %52 = vector.load %arg4[%c0_28, %c2_29, %c0_30, %c0_31] : memref<1x3x4x128xf32, #tpu.memory_space<vmem>>, vector<1x1x4x128xf32>
    %53 = vector.shape_cast %52 : vector<1x1x4x128xf32> to vector<4x128xf32>
    %54 = vector.shape_cast %51 : vector<4x128xf32> to vector<1x1x4x128xf32>
    tpu.vector_store %arg4[%c0_28, %c2_29, %c0_30, %c0_31], %54 {strides = array<i32>} : memref<1x3x4x128xf32, #tpu.memory_space<vmem>>, vector<1x1x4x128xf32>,
    return
  }
  func.func @transform_0(%arg0: i32, %arg1: i32) -> (i32, i32, i32) {
    %c0_i32 = arith.constant 0 : i32
    %c0_i32_0 = arith.constant 0 : i32
    return %arg0, %c0_i32, %arg1 : i32, i32, i32
  }
  func.func @transform_1(%arg0: i32, %arg1: i32) -> (i32, i32, i32) {
    %c0_i32 = arith.constant 0 : i32
    %c0_i32_0 = arith.constant 0 : i32
    return %arg0, %c0_i32, %arg1 : i32, i32, i32
  }
  func.func @transform_2(%arg0: i32, %arg1: i32) -> (i32, i32, i32, i32) {
    %c0_i32 = arith.constant 0 : i32
    %c0_i32_0 = arith.constant 0 : i32
    %c0_i32_1 = arith.constant 0 : i32
    %c0_i32_2 = arith.constant 0 : i32
    return %arg0, %c0_i32, %c0_i32_0, %c0_i32_1 : i32, i32, i32, i32
  }
}

</mosaic_0001>

<llo_original>
// kernel: tpu_custom_call.1
$region0: #{tpu_custom_call.1}
  #allocation0 [shape = 'u32[]', space=smem, size = 0x4, offset = 0x4, fixed_abs, tag = 'smem constant byte address 0x4 - core index']
  #allocation1 [shape = 'u32[72,128]{1,0:T(1,128)}', space=vmem, size = 0x9000, scoped, tag = 'internal scratch']
  %s0 = inlined_call_operand.hbm [shape: f32[2,4,256], index: 0, kind: input, shape index: {}]
  %s1 = inlined_call_operand.hbm [shape: s32[2,1,256], index: 1, kind: input, shape index: {}]
  %s2 = inlined_call_operand.hbm [shape: f32[2,3,4,128], index: 2, kind: output, shape index: {}]
  %s3 = sld [smem:[#allocation0]]
  $region53: #{tpu_custom_call.1} parent=0
    _
  %s5 = ssub.s32 1, %s3
  %s6 = scalar_select 0, %s5, %s3
  $region1: #{tpu_custom_call.1} parent=0
    #allocation2 [shape = 'u8[8192]{0}', space=vmem, size = 0x2000, scoped, tag = 'input window, operand 0']
    #allocation3 [shape = 's32[2]{0}', space=sflag, size = 0x8, scoped, tag = 'scoped memory for tpu_custom_call.1']
    #allocation4 [shape = 's32[2]{0}', space=sflag, size = 0x8, scoped, tag = 'scoped memory for tpu_custom_call.1']
    #allocation5 [shape = 'u8[2048]{0}', space=vmem, size = 0x800, scoped, tag = 'input window, operand 1']
    #allocation6 [shape = 's32[2]{0}', space=sflag, size = 0x8, scoped, tag = 'scoped memory for tpu_custom_call.1']
    #allocation7 [shape = 'u8[12288]{0}', space=vmem, size = 0x3000, scoped, tag = 'output window, operand 0']
    %7 = vsyncpa [#allocation3], 0
    %s8 = scalar_lea.sflag [#allocation3], 1
    %9 = vsyncpa %s8, 0
    %10 = vsyncpa [#allocation6], 0
    %s11 = scalar_lea.sflag [#allocation6], 1
    %12 = vsyncpa %s11, 0
    %13 = vsyncpa [#allocation4], 0
    %s14 = scalar_lea.sflag [#allocation4], 1
    %15 = vsyncpa %s14, 0
    loop: start=0, step=1, limit=4
    $region2: #{tpu_custom_call.1} parent=1 // loop_pre_header
      _
    $region3: #{tpu_custom_call.1} parent=1 // loop_header
      %s17 = sphi 0, %s21
      %p18 = scmp.ge.s32.totalorder %s17, 4
      %s24 = sphi 0, %s36
      %s25 = sphi 0, %s32
      %s26 = sphi 0, %s24
      %s27 = sphi 0, %s25
      %s28 = sphi 0, %s26
      %s29 = sphi 0, %s27
      %s41 = sphi 0, %s43
      %s44 = sphi 0, %s41
      %s45 = sphi 0, %s44
      %s61 = sphi 0, %s45
      %s69 = sphi 0, %s71
      %s72 = sphi 0, %s69
      %s73 = sphi 0, %s72
      %s89 = sphi 0, %s73
      %s95 = sphi 0, %s97
      %s98 = sphi 0, %s95
      %s99 = sphi 0, %s98
      %s115 = sphi 0, %s99
    $region4: #{tpu_custom_call.1} parent=1 // loop_header_branch
      %20 = sbr.rel (%p18) target = $region8
    $region5: #{tpu_custom_call.1} parent=1 // loop_body
      %s22 = ssub.s32 %s17, 1
      %s23 = ssub.s32 %s17, 2
      %s30 = sadd.s32 1, %s25
      %p31 = scmp.ge.s32.totalorder %s30, 1
      %s32 = scalar_select %p31, 0, %s30
      %s33 = sadd.s32 1, %s24
      %s34 = scalar_select %p31, %s33, %s24
      %p35 = scmp.ge.s32.totalorder %s34, 2
      %s36 = scalar_select %p35, 0, %s34
      %s37 = ssub.s32 %s24, %s36
      %s38 = ssub.s32 %s25, %s32
      %s39 = sor.u32 %s37, %s38
      %p40 = scmp.eq.s32.totalorder %s39, 0
      %s42 = sadd.s32 %s41, 1
      %s43 = scalar_select %p40, %s41, %s42
      %p46 = pneg %p40
      %p47 = scmp.eq.s32.totalorder %s17, 1
      %p48 = por %p46, %p47
      %p49 = scmp.ne.s32.totalorder %s41, %s44
      %p50 = scmp.eq.s32.totalorder %s17, 0
      %p51 = por %p49, %p50
      %p52 = scmp.ne.s32.totalorder %s41, %s44
      %p53 = scmp.eq.s32.totalorder %s22, 1
      %p54 = por %p52, %p53
      %p55 = scmp.ne.s32.totalorder %s44, %s45
      %p56 = scmp.eq.s32.totalorder %s22, 0
      %p57 = por %p55, %p56
      %p58 = scmp.ne.s32.totalorder %s44, %s45
      %p59 = scmp.eq.s32.totalorder %s23, 1
      %p60 = por %p58, %p59
      %p62 = scmp.ne.s32.totalorder %s45, %s61
      %p63 = scmp.eq.s32.totalorder %s23, 0
      %p64 = por %p62, %p63
      %s65 = ssub.s32 %s24, %s36
      %s66 = ssub.s32 %s25, %s32
      %s67 = sor.u32 %s65, %s66
      %p68 = scmp.eq.s32.totalorder %s67, 0
      %s70 = sadd.s32 %s69, 1
      %s71 = scalar_select %p68, %s69, %s70
      %p74 = pneg %p68
      %p75 = scmp.eq.s32.totalorder %s17, 1
      %p76 = por %p74, %p75
      %p77 = scmp.ne.s32.totalorder %s69, %s72
      %p78 = scmp.eq.s32.totalorder %s17, 0
      %p79 = por %p77, %p78
      %p80 = scmp.ne.s32.totalorder %s69, %s72
      %p81 = scmp.eq.s32.totalorder %s22, 1
      %p82 = por %p80, %p81
      %p83 = scmp.ne.s32.totalorder %s72, %s73
      %p84 = scmp.eq.s32.totalorder %s22, 0
      %p85 = por %p83, %p84
      %p86 = scmp.ne.s32.totalorder %s72, %s73
      %p87 = scmp.eq.s32.totalorder %s23, 1
      %p88 = por %p86, %p87
      %p90 = scmp.ne.s32.totalorder %s73, %s89
      %p91 = scmp.eq.s32.totalorder %s23, 0
      %p92 = por %p90, %p91
      %s93 = ssub.s32 %s24, %s36
      %p94 = scmp.eq.s32.totalorder %s93, 0
      %s96 = sadd.s32 %s95, 1
      %s97 = scalar_select %p94, %s95, %s96
      %p100 = pneg %p94
      %p101 = scmp.eq.s32.totalorder %s17, 1
      %p102 = por %p100, %p101
      %p103 = scmp.ne.s32.totalorder %s95, %s98
      %p104 = scmp.eq.s32.totalorder %s17, 0
      %p105 = por %p103, %p104
      %p106 = scmp.ne.s32.totalorder %s95, %s98
      %p107 = scmp.eq.s32.totalorder %s22, 1
      %p108 = por %p106, %p107
      %p109 = scmp.ne.s32.totalorder %s98, %s99
      %p110 = scmp.eq.s32.totalorder %s22, 0
      %p111 = por %p109, %p110
      %p112 = scmp.ne.s32.totalorder %s98, %s99
      %p113 = scmp.eq.s32.totalorder %s23, 1
      %p114 = por %p112, %p113
      %p116 = scmp.ne.s32.totalorder %s99, %s115
      %p117 = scmp.eq.s32.totalorder %s23, 0
      %p118 = por %p116, %p117
      %p119 = scmp.le.s32.totalorder 1, %s17
      %p120 = scmp.lt.s32.totalorder %s17, 3
      %p121 = pnand %p119, %p120
      %p122 = pneg %p121
      // Predicated region
      $region9: #{tpu_custom_call.1} parent=5 // pred_check
        _
      $region10: #{tpu_custom_call.1} parent=5 // pred_check_branch
        %124 = sbr.rel (%p121) target = $region12
      $region11: #{tpu_custom_call.1} parent=5 // pred_region
        %s125 = ssub.s32 %s17, 1
      $region12: #{tpu_custom_call.1} parent=5 // pred_fallthru
        _
      %p126 = scmp.lt.s32.totalorder %s17, 2
      // Predicated region
      $region13: #{tpu_custom_call.1} parent=5 // pred_check
        %p127 = pneg %p126
      $region14: #{tpu_custom_call.1} parent=5 // pred_check_branch
        %129 = sbr.rel (%p127) target = $region16
      $region15: #{tpu_custom_call.1} parent=5 // pred_region
        // Predicated region
        $region17: #{tpu_custom_call.1} parent=15 // pred_check
          %p130 = pneg %p51
        $region18: #{tpu_custom_call.1} parent=15 // pred_check_branch
          %132 = sbr.rel (%p130) target = $region20
        $region19: #{tpu_custom_call.1} parent=15 // pred_region
          %s133 = sand.u32 %s41, 1
          %s134 = scalar_lea.sflag [#allocation3], %s133
          %s135 = sand.u32 %s41, 1
          %s136 = smul.addr %s135, 8
          %s137 = scalar_lea.vmem [#allocation2], %s136
          %s138 = smul.u32 2, %s25
          %140 = vsyncadd %s134, 0
          %s141 = smul.addr %s24, 2
          %s142 = sadd.s32 %s138, %s141
          %s143 = smul.addr %s142, 4
          %s144 = scalar_lea.hbm %s0, %s143
          %s146 = sshll.u32 %s144, 4
          %s147 = int_to_ptr.hbm [resolvable:$true] %s146
          %s148 = sshll.u32 %s137, 4
          %s149 = int_to_ptr.vmem [resolvable:$true] %s148
          %151 = dma.hbm_to_vmem [thread:$0]  %s147, 128, %s149, %s134
        $region20: #{tpu_custom_call.1} parent=15 // pred_fallthru
          _
        // Predicated region
        $region21: #{tpu_custom_call.1} parent=15 // pred_check
          %p152 = pneg %p79
        $region22: #{tpu_custom_call.1} parent=15 // pred_check_branch
          %154 = sbr.rel (%p152) target = $region24
        $region23: #{tpu_custom_call.1} parent=15 // pred_region
          %s155 = sand.u32 %s69, 1
          %s156 = scalar_lea.sflag [#allocation6], %s155
          %s157 = sand.u32 %s69, 1
          %s158 = smul.addr %s157, 2
          %s159 = scalar_lea.vmem [#allocation5], %s158
          %s160 = smul.u32 2, %s25
          %162 = vsyncadd %s156, 0
          %s163 = smul.addr %s24, 2
          %s164 = sadd.s32 %s160, %s163
          %s165 = scalar_lea.hbm %s1, %s164
          %s167 = sshll.u32 %s165, 4
          %s168 = int_to_ptr.hbm [resolvable:$true] %s167
          %s169 = sshll.u32 %s159, 4
          %s170 = int_to_ptr.vmem [resolvable:$true] %s169
          %172 = dma.hbm_to_vmem [thread:$0]  %s168, 32, %s170, %s156
        $region24: #{tpu_custom_call.1} parent=15 // pred_fallthru
          _
      $region16: #{tpu_custom_call.1} parent=5 // pred_fallthru
        _
      %p173 = scmp.le.s32.totalorder 1, %s17
      %p174 = scmp.lt.s32.totalorder %s17, 3
      %p175 = pnand %p173, %p174
      %p176 = pneg %p175
      // Predicated region
      $region25: #{tpu_custom_call.1} parent=5 // pred_check
        _
      $region26: #{tpu_custom_call.1} parent=5 // pred_check_branch
        %178 = sbr.rel (%p175) target = $region28
      $region27: #{tpu_custom_call.1} parent=5 // pred_region
        %s179 = ssub.s32 %s17, 1
        %s180 = sand.u32 %s44, 1
        %s181 = scalar_lea.sflag [#allocation3], %s180
        %s182 = sand.u32 %s44, 1
        %s183 = smul.addr %s182, 8
        %s184 = scalar_lea.vmem [#allocation2], %s183
        // Predicated region
        $region29: #{tpu_custom_call.1} parent=27 // pred_check
          %p185 = pneg %p57
        $region30: #{tpu_custom_call.1} parent=27 // pred_check_branch
          %187 = sbr.rel (%p185) target = $region32
        $region31: #{tpu_custom_call.1} parent=27 // pred_region
          %189 = dma.done %s181, 128
        $region32: #{tpu_custom_call.1} parent=27 // pred_fallthru
          _
        %s190 = sand.u32 %s72, 1
        %s191 = scalar_lea.sflag [#allocation6], %s190
        %s192 = sand.u32 %s72, 1
        %s193 = smul.addr %s192, 2
        %s194 = scalar_lea.vmem [#allocation5], %s193
        // Predicated region
        $region33: #{tpu_custom_call.1} parent=27 // pred_check
          %p195 = pneg %p85
        $region34: #{tpu_custom_call.1} parent=27 // pred_check_branch
          %197 = sbr.rel (%p195) target = $region36
        $region35: #{tpu_custom_call.1} parent=27 // pred_region
          %199 = dma.done %s191, 32
        $region36: #{tpu_custom_call.1} parent=27 // pred_fallthru
          _
        %s200 = sand.u32 %s44, 1
        %s201 = scalar_lea.sflag [#allocation3], %s200
        %s202 = sand.u32 %s44, 1
        %s203 = smul.addr %s202, 8
        %s204 = scalar_lea.vmem [#allocation2], %s203
        %p205 = pneg %p57
        %p206 = pneg %p54
        %s207 = sand.u32 %s72, 1
        %s208 = scalar_lea.sflag [#allocation6], %s207
        %s209 = sand.u32 %s72, 1
        %s210 = smul.addr %s209, 2
        %s211 = scalar_lea.vmem [#allocation5], %s210
        %p212 = pneg %p85
        %p213 = pneg %p82
        %p214 = pneg %p111
        %p215 = pneg %p108
        %s216 = sand.u32 %s98, 1
        %s217 = scalar_lea.sflag [#allocation4], %s216
        %s218 = sand.u32 %s98, 1
        %s219 = smul.addr %s218, 12
        %s220 = scalar_lea.vmem [#allocation7], %s219
        %s221 = smul.u32 2, %s27
        %s222 = smul.u32 2, %s27
        %p223 = scmp.eq.s32.totalorder %s27, 0
        // Predicated region
        $region37: #{tpu_custom_call.1} parent=27 // pred_check
          %p224 = pneg %p223
        $region38: #{tpu_custom_call.1} parent=27 // pred_check_branch
          %226 = sbr.rel (%p224) target = $region40
        $region39: #{tpu_custom_call.1} parent=27 // pred_region
          %227 = vst [vmem:[%s220] sm:$0xf] 0.0
          %228 = vst [vmem:[%s220 + $0x4] sm:$0xf] 0.0
          %229 = vst [vmem:[%s220 + $0x8] sm:$0xf] 0.0
        $region40: #{tpu_custom_call.1} parent=27 // pred_fallthru
          _
        %v230 = vlaneseq
        %v231 = vshrl.u32 %v230, 7
        %v232 = vld [vmem:[%s184] sm:$0xf]
        %v233 = vld [vmem:[%s194] sm:$0x1]
        %v234 = vperm.slane %v233, 0
        %vm235 = vcmp.eq.s32.totalorder %v234, %v231
        %v236 = vsel %vm235, 1, 0
        %v237 = vcvt.s32.f32 %v236
        %v238 = vmul.f32 %v232, %v237
        %v239 = vadd.f32 %v238, 0.0
        %v240 = vadd.f32 %v232, 0.0
        %v241 = vadd.f32 %v237, 0.0
        %s242 = scalar_lea.vmem %s184, 4 [#allocation2]
        %v243 = vld [vmem:[%s242] sm:$0xf]
        %s244 = scalar_lea.vmem %s194, 1 [#allocation5]
        %v245 = vld [vmem:[%s244] sm:$0x1]
        %v246 = vperm.slane %v245, 0
        %vm247 = vcmp.eq.s32.totalorder %v246, %v231
        %v248 = vsel %vm247, 1, 0
        %v249 = vcvt.s32.f32 %v248
        %v250 = vmul.f32 %v243, %v249
        %v251 = vadd.f32 %v239, %v250
        %v252 = vadd.f32 %v240, %v243
        %v253 = vadd.f32 %v241, %v249
        %v254 = vld [vmem:[%s220] sm:$0xf]
        %v255 = vadd.f32 %v254, %v251
        %256 = vst [vmem:[%s220] sm:$0xf] %v255
        %s257 = scalar_lea.vmem %s220, 4 [#allocation7]
        %v258 = vld [vmem:[%s257] sm:$0xf]
        %v259 = vadd.f32 %v258, %v252
        %260 = vst [vmem:[%s257] sm:$0xf] %v259
        %s261 = scalar_lea.vmem %s220, 8 [#allocation7]
        %v262 = vld [vmem:[%s261] sm:$0xf]
        %v263 = vadd.f32 %v262, %v253
        %264 = vst [vmem:[%s261] sm:$0xf] %v263
        %s265 = sand.u32 %s98, 1
        %s266 = scalar_lea.sflag [#allocation4], %s265
        %s267 = sand.u32 %s98, 1
        %s268 = smul.addr %s267, 12
        %s269 = scalar_lea.vmem [#allocation7], %s268
        // Predicated region
        $region41: #{tpu_custom_call.1} parent=27 // pred_check
          %p270 = pneg %p108
        $region42: #{tpu_custom_call.1} parent=27 // pred_check_branch
          %272 = sbr.rel (%p270) target = $region44
        $region43: #{tpu_custom_call.1} parent=27 // pred_region
          %274 = vsyncadd %s266, 0
          %s275 = smul.addr %s26, 3
          %s276 = smul.addr %s275, 4
          %s277 = scalar_lea.hbm %s2, %s276
          %s278 = sshll.u32 %s269, 4
          %s279 = int_to_ptr.vmem [resolvable:$true] %s278
          %s280 = sshll.u32 %s277, 4
          %s281 = int_to_ptr.hbm [resolvable:$true] %s280
          %286 = dma.vmem_to_hbm [thread:$0]  %s279, 192, %s281, %s266, 64, 64, 4
        $region44: #{tpu_custom_call.1} parent=27 // pred_fallthru
          _
      $region28: #{tpu_custom_call.1} parent=5 // pred_fallthru
        _
      %p287 = scmp.le.s32.totalorder 2, %s17
      // Predicated region
      $region45: #{tpu_custom_call.1} parent=5 // pred_check
        %p288 = pneg %p287
      $region46: #{tpu_custom_call.1} parent=5 // pred_check_branch
        %290 = sbr.rel (%p288) target = $region48
      $region47: #{tpu_custom_call.1} parent=5 // pred_region
        %s291 = ssub.s32 %s17, 2
        // Predicated region
        $region49: #{tpu_custom_call.1} parent=47 // pred_check
          %p292 = pneg %p114
        $region50: #{tpu_custom_call.1} parent=47 // pred_check_branch
          %294 = sbr.rel (%p292) target = $region52
        $region51: #{tpu_custom_call.1} parent=47 // pred_region
          %s295 = sand.u32 %s99, 1
          %s296 = scalar_lea.sflag [#allocation4], %s295
          %s297 = sand.u32 %s99, 1
          %s298 = smul.addr %s297, 12
          %s299 = scalar_lea.vmem [#allocation7], %s298
          %301 = dma.done %s296, 192
        $region52: #{tpu_custom_call.1} parent=47 // pred_fallthru
          _
      $region48: #{tpu_custom_call.1} parent=5 // pred_fallthru
        _
    $region6: #{tpu_custom_call.1} parent=1 // loop_footer
      %s21 = sadd.s32 1, %s17
    $region7: #{tpu_custom_call.1} parent=1 // loop_footer_branch
      %16 = sbr.rel target = $region3
    $region8: #{tpu_custom_call.1} parent=1 // loop_exit
      _
    %302 = vsyncpa [#allocation3], 1
    %s303 = scalar_lea.sflag [#allocation3], 1
    %304 = vsyncpa %s303, 1
    %305 = vsyncpa [#allocation6], 1
    %s306 = scalar_lea.sflag [#allocation6], 1
    %307 = vsyncpa %s306, 1
    %308 = vsyncpa [#allocation4], 1
    %s309 = scalar_lea.sflag [#allocation4], 1
    %310 = vsyncpa %s309, 1

</llo_original>
